<compile_context>
chip_gen: v5e
topology: v5e:2x2
jax: 0.10.0
libtpu: 0.0.40
codegen_flags: <defaults>
</compile_context>

<pallas_src>
import functools

import jax
import jax.numpy as jnp
from jax.experimental import pallas as pl
from jax.experimental.pallas import tpu as pltpu

_SUBLANE = 8
_LANE = 128


def _round_up(x, m):
    return ((x + m - 1) // m) * m


def _cdiv(a, b):
    return (a + b - 1) // b


# ---------------------------------------------------------------------------
# Kernel: fused Linear -> ReLU -> Linear -> ReLU on one row tile.
# ---------------------------------------------------------------------------
def relation_encoder_kernel(x_ref, w1_ref, b1_ref, w2_ref, b2_ref, o_ref):
    # In-kernel cast of the streamed activations to the MXU operand dtype
    # (free under MXU issue slots; x stays in its HBM dtype on the wire).
    x = x_ref[...].astype(w1_ref.dtype)
    h = jnp.dot(x, w1_ref[...], preferred_element_type=jnp.float32)
    h = jnp.maximum(h + b1_ref[...], 0.0)                      # f32 bias + ReLU (VPU)
    o = jnp.dot(h.astype(w2_ref.dtype), w2_ref[...],
                preferred_element_type=jnp.float32)
    o = jnp.maximum(o + b2_ref[...], 0.0)
    o_ref[...] = o.astype(o_ref.dtype)


# ---------------------------------------------------------------------------
# One-time parameter preparation (NOT in the per-call path).
# Weights stored as [in_features, out_features] (transpose of torch Linear);
# biases as [1, out_features].  Only the internal hidden dim is padded.
# ---------------------------------------------------------------------------
def prepare_params(w1, b1, w2, b2, *, mxu_dtype=None):
    if mxu_dtype is None:
        mxu_dtype = w1.dtype
    input_size, hidden_size = w1.shape
    output_size = w2.shape[1]
    lane_mult = 256 if hidden_size >= 256 else _LANE   # 256-wide MXU on v6e/v7x
    hid_p = _round_up(hidden_size, lane_mult)
    w1p = jnp.pad(w1, ((0, 0), (0, hid_p - hidden_size))).astype(mxu_dtype)
    b1p = jnp.pad(b1, ((0, 0), (0, hid_p - hidden_size))).astype(jnp.float32)
    w2p = jnp.pad(w2, ((0, hid_p - hidden_size), (0, 0))).astype(mxu_dtype)
    b2p = b2.astype(jnp.float32)
    return w1p, b1p, w2p, b2p


# ---------------------------------------------------------------------------
# Forward pass: x [n_relations, input_size] -> [n_relations, output_size].
# ---------------------------------------------------------------------------
@functools.partial(jax.jit, static_argnames=("max_block_rows",))
def relation_encoder(x, w1p, b1p, w2p, b2p, *, max_block_rows=1024):
    n_rel, input_size = x.shape
    hid_p = w1p.shape[1]
    output_size = w2p.shape[1]
    out_dtype = x.dtype

    # ---- row-tile selection (all static at trace time) --------------------
    # Keep at least two grid steps when there is enough work so both v7x
    # TensorCores get a slice of the "parallel" rows axis.
    block_rows = max(_SUBLANE,
                     min(_round_up(max_block_rows, _SUBLANE),
                         _round_up(_cdiv(n_rel, 2), _SUBLANE)))

    def vmem_bytes(rows, weight_bufs):
        x_b = 2 * rows * input_size * x.dtype.itemsize                  # double-buffered
        o_b = 2 * rows * output_size * jnp.dtype(out_dtype).itemsize    # double-buffered
        h_b = rows * hid_p * 4                                           # f32 hidden act
        w_b = weight_bufs * (input_size * hid_p + hid_p * output_size) * w1p.dtype.itemsize
        bias_b = weight_bufs * _SUBLANE * (hid_p + output_size) * 4
        return x_b + o_b + h_b + w_b + bias_b

    vmem_budget = 40 << 20  # per-core budget (v7x physical VMEM is 64 MiB)

    if vmem_bytes(_SUBLANE, 1) > vmem_budget:
        # TODO(synk): add a K/N-tiled fallback (grid over hidden/output tiles
        # with an f32 VMEM accumulator + pl.when init/finalize) for layer sizes
        # whose weights cannot stay resident in VMEM.
        raise NotImplementedError(
            "RelationEncoder weights too large to keep resident in VMEM")

    # Single-buffer the grid-invariant weights only when they are big enough
    # for double-buffering to matter (halves resident weight footprint).
    single_buffer_weights = (hasattr(pl, "Buffered")
                             and vmem_bytes(0, 2) > (8 << 20))
    weight_bufs = 1 if single_buffer_weights else 2

    # Shrink the row tile if the estimate busts the VMEM budget.
    while block_rows > _SUBLANE and vmem_bytes(block_rows, weight_bufs) > vmem_budget:
        block_rows = _round_up(block_rows // 2, _SUBLANE)

    grid = (_cdiv(n_rel, block_rows),)

    def _resident_spec(shape):
        # Grid-invariant parameter block: stays resident in VMEM across steps.
        index_map = lambda i: (0, 0)
        if single_buffer_weights:
            try:
                return pl.BlockSpec(shape, index_map,
                                    pipeline_mode=pl.Buffered(buffer_count=1))
            except TypeError:   # older jax without pipeline_mode support
                pass
        return pl.BlockSpec(shape, index_map)

    vmem_limit = int(min(64 << 20,
                         max(32 << 20, 2 * vmem_bytes(block_rows, weight_bufs))))

    return pl.pallas_call(
        relation_encoder_kernel,
        out_shape=jax.ShapeDtypeStruct((n_rel, output_size), out_dtype),
        grid_spec=pltpu.PrefetchScalarGridSpec(
            num_scalar_prefetch=0,
            grid=grid,
            in_specs=[
                # Streamed activations: unpadded rows AND features (block last
                # dims equal the full array dims, so no (8,128) restriction and
                # no wrapper pad/slice HBM passes).  The partial last row block
                # is handled by Pallas masking; its garbage rows never mix into
                # real rows (row-wise MLP) and are dropped on the masked store.
                pl.BlockSpec((block_rows, input_size), lambda i: (i, 0)),
                # Parameters (resident in VMEM across the rows grid).
                _resident_spec((input_size, hid_p)),
                _resident_spec((1, hid_p)),
                _resident_spec((hid_p, output_size)),
                _resident_spec((1, output_size)),
            ],
            out_specs=pl.BlockSpec((block_rows, output_size), lambda i: (i, 0)),
        ),
        compiler_params=pltpu.CompilerParams(
            dimension_semantics=("parallel",),
            vmem_limit_bytes=vmem_limit),
    )(x, w1p, b1p, w2p, b2p)


# ---------------------------------------------------------------------------
# PyTorch-style nn.Linear init: U(-1/sqrt(fan_in), 1/sqrt(fan_in)).
# ---------------------------------------------------------------------------
def init_params(key, input_size, hidden_size, output_size, dtype=jnp.float32):
    k1, k2, k3, k4 = jax.random.split(key, 4)
    bound1 = 1.0 / (input_size ** 0.5)
    bound2 = 1.0 / (hidden_size ** 0.5)
    w1 = jax.random.uniform(k1, (input_size, hidden_size), dtype, -bound1, bound1)
    b1 = jax.random.uniform(k2, (1, hidden_size), dtype, -bound1, bound1)
    w2 = jax.random.uniform(k3, (hidden_size, output_size), dtype, -bound2, bound2)
    b2 = jax.random.uniform(k4, (1, output_size), dtype, -bound2, bound2)
    return w1, b1, w2, b2


if __name__ == "__main__":
    key = jax.random.PRNGKey(0)
    kx, kp = jax.random.split(key)

    # Small shapes consistent with the module; n_relations deliberately NOT a
    # multiple of 8 to exercise the masked partial last row block.
    n_relations = 20
    input_size = 32
    hidden_size = 64
    output_size = 32

    x = jax.random.normal(kx, (n_relations, input_size), jnp.float32)
    w1, b1, w2, b2 = init_params(kp, input_size, hidden_size, output_size)

    # Pure-JAX reference (same semantics as the PyTorch module).
    ref = jnp.maximum(jnp.maximum(x @ w1 + b1, 0.0) @ w2 + b2, 0.0)

    # Exact f32 path (module semantics).
    params_f32 = prepare_params(w1, b1, w2, b2)
    out = jax.block_until_ready(relation_encoder(x, *params_f32))
    assert out.shape == (n_relations, output_size)
    assert jnp.allclose(out, ref, atol=1e-5, rtol=1e-5)

    # bf16-MXU fast path (recommended on v5e/v6e/v7x when accuracy allows):
    # weights pre-cast once, x cast in-kernel, accumulation/bias/ReLU in f32.
    params_bf16 = prepare_params(w1, b1, w2, b2, mxu_dtype=jnp.bfloat16)
    out_bf16 = jax.block_until_ready(relation_encoder(x, *params_bf16))
    assert out_bf16.shape == (n_relations, output_size)
    assert jnp.allclose(out_bf16, ref, atol=3e-2, rtol=3e-2)

    print("KERNEL_OK")
</pallas_src>

<mosaic_0001>
module attributes {stable_mosaic.version = 11 : i64} {
  func.func @relation_encoder_kernel(%arg0: i32, %arg1: memref<16x32xf32, #tpu.memory_space<vmem>>, %arg2: memref<32x128xf32, #tpu.memory_space<vmem>>, %arg3: memref<1x128xf32, #tpu.memory_space<vmem>>, %arg4: memref<128x32xf32, #tpu.memory_space<vmem>>, %arg5: memref<1x32xf32, #tpu.memory_space<vmem>>, %arg6: memref<16x32xf32, #tpu.memory_space<vmem>>) attributes {dimension_semantics = [#tpu.dimension_semantics<parallel>], iteration_bounds = array<i64: 2>, scalar_prefetch = 0 : i64, scratch_operands = 0 : i64, tpu.core_type = #tpu.core_type<tc>, window_params = [{transform_indices = @transform_0, window_bounds = array<i64: 16, 32>}, {pipeline_mode = #tpu.pipeline_mode<synchronous>, transform_indices = @transform_1, window_bounds = array<i64: 32, 128>}, {pipeline_mode = #tpu.pipeline_mode<synchronous>, transform_indices = @transform_2, window_bounds = array<i64: 1, 128>}, {pipeline_mode = #tpu.pipeline_mode<synchronous>, transform_indices = @transform_3, window_bounds = array<i64: 128, 32>}, {pipeline_mode = #tpu.pipeline_mode<synchronous>, transform_indices = @transform_4, window_bounds = array<i64: 1, 32>}, {transform_indices = @transform_5, window_bounds = array<i64: 16, 32>}]} {
    %c0 = arith.constant 0 : index
    %c0_0 = arith.constant 0 : index
    %0 = vector.load %arg1[%c0, %c0_0] : memref<16x32xf32, #tpu.memory_space<vmem>>, vector<16x32xf32>
    %c0_1 = arith.constant 0 : index
    %c0_2 = arith.constant 0 : index
    %1 = vector.load %arg2[%c0_1, %c0_2] : memref<32x128xf32, #tpu.memory_space<vmem>>, vector<32x128xf32>
    %cst = arith.constant dense<0.000000e+00> : vector<16x128xf32>
    %2 = tpu.matmul %0, %1, %cst {dimension_numbers = #tpu.dot_dimension_numbers<[1], [0], [0], [1], [0, 0, 1, 1], [], []>} : vector<16x32xf32>, vector<32x128xf32>, vector<16x128xf32> -> vector<16x128xf32>
    %c0_3 = arith.constant 0 : index
    %c0_4 = arith.constant 0 : index
    %3 = vector.load %arg3[%c0_3, %c0_4] : memref<1x128xf32, #tpu.memory_space<vmem>>, vector<1x128xf32>
    %4 = vector.broadcast %3 : vector<1x128xf32> to vector<16x128xf32>
    %5 = arith.addf %2, %4 : vector<16x128xf32>
    %cst_5 = arith.constant 0.000000e+00 : f32
    %6 = vector.broadcast %cst_5 : f32 to vector<16x128xf32>
    %7 = arith.maximumf %5, %6 : vector<16x128xf32>
    %c0_6 = arith.constant 0 : index
    %c0_7 = arith.constant 0 : index
    %8 = vector.load %arg4[%c0_6, %c0_7] : memref<128x32xf32, #tpu.memory_space<vmem>>, vector<128x32xf32>
    %cst_8 = arith.constant dense<0.000000e+00> : vector<16x32xf32>
    %9 = tpu.matmul %7, %8, %cst_8 {dimension_numbers = #tpu.dot_dimension_numbers<[1], [0], [0], [1], [0, 0, 1, 1], [], []>} : vector<16x128xf32>, vector<128x32xf32>, vector<16x32xf32> -> vector<16x32xf32>
    %c0_9 = arith.constant 0 : index
    %c0_10 = arith.constant 0 : index
    %10 = vector.load %arg5[%c0_9, %c0_10] : memref<1x32xf32, #tpu.memory_space<vmem>>, vector<1x32xf32>
    %11 = vector.broadcast %10 : vector<1x32xf32> to vector<16x32xf32>
    %12 = arith.addf %9, %11 : vector<16x32xf32>
    %cst_11 = arith.constant 0.000000e+00 : f32
    %13 = vector.broadcast %cst_11 : f32 to vector<16x32xf32>
    %14 = arith.maximumf %12, %13 : vector<16x32xf32>
    %c0_12 = arith.constant 0 : index
    %c0_13 = arith.constant 0 : index
    %15 = vector.load %arg6[%c0_12, %c0_13] : memref<16x32xf32, #tpu.memory_space<vmem>>, vector<16x32xf32>
    tpu.vector_store %arg6[%c0_12, %c0_13], %14 {strides = array<i32>} : memref<16x32xf32, #tpu.memory_space<vmem>>, vector<16x32xf32>,
    return
  }
  func.func @transform_0(%arg0: i32) -> (i32, i32) {
    %c0_i32 = arith.constant 0 : i32
    %c0_i32_0 = arith.constant 0 : i32
    return %arg0, %c0_i32 : i32, i32
  }
  func.func @transform_1(%arg0: i32) -> (i32, i32) {
    %c0_i32 = arith.constant 0 : i32
    %c0_i32_0 = arith.constant 0 : i32
    %c0_i32_1 = arith.constant 0 : i32
    return %c0_i32, %c0_i32_0 : i32, i32
  }
  func.func @transform_2(%arg0: i32) -> (i32, i32) {
    %c0_i32 = arith.constant 0 : i32
    %c0_i32_0 = arith.constant 0 : i32
    %c0_i32_1 = arith.constant 0 : i32
    return %c0_i32, %c0_i32_0 : i32, i32
  }
  func.func @transform_3(%arg0: i32) -> (i32, i32) {
    %c0_i32 = arith.constant 0 : i32
    %c0_i32_0 = arith.constant 0 : i32
    %c0_i32_1 = arith.constant 0 : i32
    return %c0_i32, %c0_i32_0 : i32, i32
  }
  func.func @transform_4(%arg0: i32) -> (i32, i32) {
    %c0_i32 = arith.constant 0 : i32
    %c0_i32_0 = arith.constant 0 : i32
    %c0_i32_1 = arith.constant 0 : i32
    return %c0_i32, %c0_i32_0 : i32, i32
  }
  func.func @transform_5(%arg0: i32) -> (i32, i32) {
    %c0_i32 = arith.constant 0 : i32
    %c0_i32_0 = arith.constant 0 : i32
    return %arg0, %c0_i32 : i32, i32
  }
}

</mosaic_0001>

<llo_original>
// kernel: relation_encoder.1
$region0: #{relation_encoder.1}
  #allocation0 [shape = 'u32[]', space=smem, size = 0x4, offset = 0x4, fixed_abs, tag = 'smem constant byte address 0x4 - core index']
  #allocation1 [shape = 'u32[72,128]{1,0:T(1,128)}', space=vmem, size = 0x9000, scoped, tag = 'internal scratch']
  %s0 = inlined_call_operand.vmem [shape: f32[20,32], index: 0, kind: input, shape index: {}]
  %s1 = inlined_call_operand.vmem [shape: f32[32,128], index: 1, kind: input, shape index: {}]
  %s2 = inlined_call_operand.vmem [shape: f32[1,128], index: 2, kind: input, shape index: {}]
  %s3 = inlined_call_operand.vmem [shape: f32[128,32], index: 3, kind: input, shape index: {}]
  %s4 = inlined_call_operand.vmem [shape: f32[1,32], index: 4, kind: input, shape index: {}]
  %s5 = inlined_call_operand.hbm [shape: f32[20,32], index: 5, kind: output, shape index: {}]
  %s6 = sld [smem:[#allocation0]]
  $region53: #{relation_encoder.1} parent=0
    _
  %s8 = ssub.s32 1, %s6
  %s9 = scalar_select 0, %s8, %s6
  $region1: #{relation_encoder.1} parent=0
    #allocation2 [shape = 'u8[16384]{0}', space=vmem, size = 0x4000, scoped, tag = 'output window, operand 0']
    #allocation3 [shape = 's32[2]{0}', space=sflag, size = 0x8, scoped, tag = 'scoped memory for relation_encoder.1']
    %10 = vsyncpa [#allocation3], 0
    %s11 = scalar_lea.sflag [#allocation3], 1
    %12 = vsyncpa %s11, 0
    loop: start=0, step=1, limit=4
    $region2: #{relation_encoder.1} parent=1 // loop_pre_header
      _
    $region3: #{relation_encoder.1} parent=1 // loop_header
      %s14 = sphi 0, %s18
      %p15 = scmp.ge.s32.totalorder %s14, 4
      %s24 = sphi 0, %s26
      %s27 = sphi 0, %s24
      %s28 = sphi 0, %s27
      %s44 = sphi 0, %s28
      %s48 = sphi 0, %s48
      %s50 = sphi 0, %s48
      %s51 = sphi 0, %s50
      %s65 = sphi 0, %s51
      %s69 = sphi 0, %s69
      %s71 = sphi 0, %s69
      %s72 = sphi 0, %s71
      %s86 = sphi 0, %s72
      %s90 = sphi 0, %s90
      %s92 = sphi 0, %s90
      %s93 = sphi 0, %s92
      %s107 = sphi 0, %s93
      %s111 = sphi 0, %s111
      %s113 = sphi 0, %s111
      %s114 = sphi 0, %s113
      %s128 = sphi 0, %s114
      %s134 = sphi 0, %s136
      %s137 = sphi 0, %s134
      %s138 = sphi 0, %s137
      %s154 = sphi 0, %s138
    $region4: #{relation_encoder.1} parent=1 // loop_header_branch
      %17 = sbr.rel (%p15) target = $region8
    $region5: #{relation_encoder.1} parent=1 // loop_body
      %s19 = ssub.s32 %s14, 1
      %s20 = ssub.s32 %s14, 2
      %s21 = sadd.s32 %s14, 1
      %s22 = ssub.s32 %s14, %s21
      %p23 = scmp.eq.s32.totalorder %s22, 0
      %s25 = sadd.s32 %s24, 1
      %s26 = scalar_select %p23, %s24, %s25
      %p29 = pneg %p23
      %p30 = scmp.eq.s32.totalorder %s14, 1
      %p31 = por %p29, %p30
      %p32 = scmp.ne.s32.totalorder %s24, %s27
      %p33 = scmp.eq.s32.totalorder %s14, 0
      %p34 = por %p32, %p33
      %p35 = scmp.ne.s32.totalorder %s24, %s27
      %p36 = scmp.eq.s32.totalorder %s19, 1
      %p37 = por %p35, %p36
      %p38 = scmp.ne.s32.totalorder %s27, %s28
      %p39 = scmp.eq.s32.totalorder %s19, 0
      %p40 = por %p38, %p39
      %p41 = scmp.ne.s32.totalorder %s27, %s28
      %p42 = scmp.eq.s32.totalorder %s20, 1
      %p43 = por %p41, %p42
      %p45 = scmp.ne.s32.totalorder %s28, %s44
      %p46 = scmp.eq.s32.totalorder %s20, 0
      %p47 = por %p45, %p46
      %s49 = sadd.s32 %s48, 1
      %p52 = scmp.eq.s32.totalorder %s14, 1
      %p53 = scmp.ne.s32.totalorder %s48, %s50
      %p54 = scmp.eq.s32.totalorder %s14, 0
      %p55 = por %p53, %p54
      %p56 = scmp.ne.s32.totalorder %s48, %s50
      %p57 = scmp.eq.s32.totalorder %s19, 1
      %p58 = por %p56, %p57
      %p59 = scmp.ne.s32.totalorder %s50, %s51
      %p60 = scmp.eq.s32.totalorder %s19, 0
      %p61 = por %p59, %p60
      %p62 = scmp.ne.s32.totalorder %s50, %s51
      %p63 = scmp.eq.s32.totalorder %s20, 1
      %p64 = por %p62, %p63
      %p66 = scmp.ne.s32.totalorder %s51, %s65
      %p67 = scmp.eq.s32.totalorder %s20, 0
      %p68 = por %p66, %p67
      %s70 = sadd.s32 %s69, 1
      %p73 = scmp.eq.s32.totalorder %s14, 1
      %p74 = scmp.ne.s32.totalorder %s69, %s71
      %p75 = scmp.eq.s32.totalorder %s14, 0
      %p76 = por %p74, %p75
      %p77 = scmp.ne.s32.totalorder %s69, %s71
      %p78 = scmp.eq.s32.totalorder %s19, 1
      %p79 = por %p77, %p78
      %p80 = scmp.ne.s32.totalorder %s71, %s72
      %p81 = scmp.eq.s32.totalorder %s19, 0
      %p82 = por %p80, %p81
      %p83 = scmp.ne.s32.totalorder %s71, %s72
      %p84 = scmp.eq.s32.totalorder %s20, 1
      %p85 = por %p83, %p84
      %p87 = scmp.ne.s32.totalorder %s72, %s86
      %p88 = scmp.eq.s32.totalorder %s20, 0
      %p89 = por %p87, %p88
      %s91 = sadd.s32 %s90, 1
      %p94 = scmp.eq.s32.totalorder %s14, 1
      %p95 = scmp.ne.s32.totalorder %s90, %s92
      %p96 = scmp.eq.s32.totalorder %s14, 0
      %p97 = por %p95, %p96
      %p98 = scmp.ne.s32.totalorder %s90, %s92
      %p99 = scmp.eq.s32.totalorder %s19, 1
      %p100 = por %p98, %p99
      %p101 = scmp.ne.s32.totalorder %s92, %s93
      %p102 = scmp.eq.s32.totalorder %s19, 0
      %p103 = por %p101, %p102
      %p104 = scmp.ne.s32.totalorder %s92, %s93
      %p105 = scmp.eq.s32.totalorder %s20, 1
      %p106 = por %p104, %p105
      %p108 = scmp.ne.s32.totalorder %s93, %s107
      %p109 = scmp.eq.s32.totalorder %s20, 0
      %p110 = por %p108, %p109
      %s112 = sadd.s32 %s111, 1
      %p115 = scmp.eq.s32.totalorder %s14, 1
      %p116 = scmp.ne.s32.totalorder %s111, %s113
      %p117 = scmp.eq.s32.totalorder %s14, 0
      %p118 = por %p116, %p117
      %p119 = scmp.ne.s32.totalorder %s111, %s113
      %p120 = scmp.eq.s32.totalorder %s19, 1
      %p121 = por %p119, %p120
      %p122 = scmp.ne.s32.totalorder %s113, %s114
      %p123 = scmp.eq.s32.totalorder %s19, 0
      %p124 = por %p122, %p123
      %p125 = scmp.ne.s32.totalorder %s113, %s114
      %p126 = scmp.eq.s32.totalorder %s20, 1
      %p127 = por %p125, %p126
      %p129 = scmp.ne.s32.totalorder %s114, %s128
      %p130 = scmp.eq.s32.totalorder %s20, 0
      %p131 = por %p129, %p130
      %s132 = ssub.s32 %s14, %s21
      %p133 = scmp.eq.s32.totalorder %s132, 0
      %s135 = sadd.s32 %s134, 1
      %s136 = scalar_select %p133, %s134, %s135
      %p139 = pneg %p133
      %p140 = scmp.eq.s32.totalorder %s14, 1
      %p141 = por %p139, %p140
      %p142 = scmp.ne.s32.totalorder %s134, %s137
      %p143 = scmp.eq.s32.totalorder %s14, 0
      %p144 = por %p142, %p143
      %p145 = scmp.ne.s32.totalorder %s134, %s137
      %p146 = scmp.eq.s32.totalorder %s19, 1
      %p147 = por %p145, %p146
      %p148 = scmp.ne.s32.totalorder %s137, %s138
      %p149 = scmp.eq.s32.totalorder %s19, 0
      %p150 = por %p148, %p149
      %p151 = scmp.ne.s32.totalorder %s137, %s138
      %p152 = scmp.eq.s32.totalorder %s20, 1
      %p153 = por %p151, %p152
      %p155 = scmp.ne.s32.totalorder %s138, %s154
      %p156 = scmp.eq.s32.totalorder %s20, 0
      %p157 = por %p155, %p156
      %p158 = scmp.le.s32.totalorder 1, %s14
      %p159 = scmp.lt.s32.totalorder %s14, 3
      %p160 = pnand %p158, %p159
      %p161 = pneg %p160
      // Predicated region
      $region9: #{relation_encoder.1} parent=5 // pred_check
        _
      $region10: #{relation_encoder.1} parent=5 // pred_check_branch
        %163 = sbr.rel (%p160) target = $region12
      $region11: #{relation_encoder.1} parent=5 // pred_region
        %s164 = ssub.s32 %s14, 1
        // Predicated region
        $region13: #{relation_encoder.1} parent=11 // pred_check
          %p165 = pneg %p61
        $region14: #{relation_encoder.1} parent=11 // pred_check_branch
          %167 = sbr.rel (%p165) target = $region16
        $region15: #{relation_encoder.1} parent=11 // pred_region
          _
        $region16: #{relation_encoder.1} parent=11 // pred_fallthru
          _
        // Predicated region
        $region17: #{relation_encoder.1} parent=11 // pred_check
          %p168 = pneg %p82
        $region18: #{relation_encoder.1} parent=11 // pred_check_branch
          %170 = sbr.rel (%p168) target = $region20
        $region19: #{relation_encoder.1} parent=11 // pred_region
          _
        $region20: #{relation_encoder.1} parent=11 // pred_fallthru
          _
        // Predicated region
        $region21: #{relation_encoder.1} parent=11 // pred_check
          %p171 = pneg %p103
        $region22: #{relation_encoder.1} parent=11 // pred_check_branch
          %173 = sbr.rel (%p171) target = $region24
        $region23: #{relation_encoder.1} parent=11 // pred_region
          _
        $region24: #{relation_encoder.1} parent=11 // pred_fallthru
          _
        // Predicated region
        $region25: #{relation_encoder.1} parent=11 // pred_check
          %p174 = pneg %p124
        $region26: #{relation_encoder.1} parent=11 // pred_check_branch
          %176 = sbr.rel (%p174) target = $region28
        $region27: #{relation_encoder.1} parent=11 // pred_region
          _
        $region28: #{relation_encoder.1} parent=11 // pred_fallthru
          _
      $region12: #{relation_encoder.1} parent=5 // pred_fallthru
        _
      %p177 = scmp.lt.s32.totalorder %s14, 2
      // Predicated region
      $region29: #{relation_encoder.1} parent=5 // pred_check
        %p178 = pneg %p177
      $region30: #{relation_encoder.1} parent=5 // pred_check_branch
        %180 = sbr.rel (%p178) target = $region32
      $region31: #{relation_encoder.1} parent=5 // pred_region
        // Predicated region
        $region33: #{relation_encoder.1} parent=31 // pred_check
          %p181 = pneg %p34
        $region34: #{relation_encoder.1} parent=31 // pred_check_branch
          %183 = sbr.rel (%p181) target = $region36
        $region35: #{relation_encoder.1} parent=31 // pred_region
          %s184 = smul.u32 2, %s14
          %s185 = ssub.s32 3, %s184
          %p186 = scmp.lt.s32.totalorder %s185, 2
          %s187 = scalar_select %p186, %s185, 2
          %s188 = smul.u32 8, %s187
          %p189 = scmp.lt.s32.totalorder %s184, 2
          %s190 = scalar_select %p189, %s184, 2
          %s191 = smul.addr %s190, 8
          %s192 = scalar_lea.vmem %s0, %s191
          %s193 = smul.u32 2, %s14
          %s194 = ssub.s32 3, %s193
          %p195 = scmp.lt.s32.totalorder %s194, 2
          %s196 = scalar_select %p195, %s194, 2
          %s197 = smul.u32 8, %s196
        $region36: #{relation_encoder.1} parent=31 // pred_fallthru
          _
      $region32: #{relation_encoder.1} parent=5 // pred_fallthru
        _
      %p198 = scmp.le.s32.totalorder 1, %s14
      %p199 = scmp.lt.s32.totalorder %s14, 3
      %p200 = pnand %p198, %p199
      %p201 = pneg %p200
      // Predicated region
      $region37: #{relation_encoder.1} parent=5 // pred_check
        _
      $region38: #{relation_encoder.1} parent=5 // pred_check_branch
        %203 = sbr.rel (%p200) target = $region40
      $region39: #{relation_encoder.1} parent=5 // pred_region
        %s204 = ssub.s32 %s14, 1
        %s205 = smul.u32 2, %s19
        %s206 = ssub.s32 3, %s205
        %p207 = scmp.lt.s32.totalorder %s206, 2
        %s208 = scalar_select %p207, %s206, 2
        %s209 = smul.u32 8, %s208
        %p210 = scmp.lt.s32.totalorder %s205, 2
        %s211 = scalar_select %p210, %s205, 2
        %s212 = smul.addr %s211, 8
        %s213 = scalar_lea.vmem %s0, %s212
        %p214 = pneg %p40
        %p215 = pneg %p37
        %p216 = pneg %p61
        %p217 = pneg %p58
        %p218 = pneg %p82
        %p219 = pneg %p79
        %p220 = pneg %p103
        %p221 = pneg %p100
        %p222 = pneg %p124
        %p223 = pneg %p121
        %p224 = pneg %p150
        %p225 = pneg %p147
        %s226 = sand.u32 %s137, 1
        %s227 = scalar_lea.sflag [#allocation3], %s226
        %s228 = sand.u32 %s137, 1
        %s229 = smul.addr %s228, 16
        %s230 = scalar_lea.vmem [#allocation2], %s229
        %s231 = smul.u32 2, %s19
        %s232 = ssub.s32 3, %s231
        %p233 = scmp.lt.s32.totalorder %s232, 2
        %s234 = scalar_select %p233, %s232, 2
        %s235 = smul.u32 8, %s234
        %p236 = scmp.lt.s32.totalorder %s231, 2
        %s237 = scalar_select %p236, %s231, 2
        %s238 = smul.addr %s237, 8
        %s239 = scalar_lea.vmem %s0, %s238
        %s240 = smul.u32 2, %s19
        %s241 = ssub.s32 3, %s240
        %p242 = scmp.lt.s32.totalorder %s241, 2
        %s243 = scalar_select %p242, %s241, 2
        %s244 = smul.u32 8, %s243
        %s245 = smul.u32 2, %s19
        %s246 = ssub.s32 3, %s245
        %p247 = scmp.lt.s32.totalorder %s246, 2
        %s248 = scalar_select %p247, %s246, 2
        %s249 = smul.u32 8, %s248
        %v250 = vld [vmem:[%s239] sm:$0xff]
        %v251 = vld [vmem:[%s239 + $0x8] sm:$0xff]
        %v252 = vld [vmem:[%s1] sm:$0xff]
        %v253 = vld [vmem:[%s1 + $0x8] sm:$0xff]
        %v254 = vld [vmem:[%s1 + $0x10] sm:$0xff]
        %v255 = vld [vmem:[%s1 + $0x18] sm:$0xff]
        %v256 = vld [vmem:[%s2] sm:$0x1]
        %v258 = vperm.slane %v256, 0
        %vm260 = vcmask 261120
        %v262 = vsel %vm260, %v250, 0
        %v265 = vsel %vm260, %v251, 0
        %267 = vmatpush.msra.mxu0 0.0
        %268 = vmatpush.msra.mxu0 0.0
        %269 = vmatpush.msra.mxu0 0.0
        %270 = vmatpush.msra.mxu0 0.0
        %271 = vmatpush.msra.mxu0 0.0
        %272 = vmatpush.msra.mxu0 0.0
        %273 = vmatpush.msra.mxu0 0.0
        %274 = vmatpush.msra.mxu0 0.0
        %275 = vmatpush.msra.mxu0 0.0
        %276 = vmatpush.msra.mxu0 0.0
        %277 = vmatpush.msra.mxu0 0.0
        %278 = vmatpush.msra.mxu0 0.0
        %279 = vmatpush.msra.mxu0 %v255
        %280 = vmatpush.msra.mxu0 %v254
        %281 = vmatpush.msra.mxu0 %v253
        %282 = vmatpush.msra.mxu0 %v252
        %283 = vmatmul.f32.gmra.mxu0 %v262
        %v284 = vpop.f32.mrf.mxu0
        %v285 = vadd.f32 %v258, %v284
        %286 = vmatmul.f32.gmra.mxu0 %v265
        %v287 = vpop.f32.mrf.mxu0
        %v288 = vadd.f32 %v258, %v287
        %289 = vdwg.mxu0
        %v290 = vmax.f32 %v285, 0.0
        %v291 = vmax.f32 %v288, 0.0
        %v292 = vld [vmem:[%s3] sm:$0xff]
        %v293 = vld [vmem:[%s3 + $0x8] sm:$0xff]
        %v294 = vld [vmem:[%s3 + $0x10] sm:$0xff]
        %v295 = vld [vmem:[%s3 + $0x18] sm:$0xff]
        %v296 = vld [vmem:[%s3 + $0x20] sm:$0xff]
        %v297 = vld [vmem:[%s3 + $0x28] sm:$0xff]
        %v298 = vld [vmem:[%s3 + $0x30] sm:$0xff]
        %v299 = vld [vmem:[%s3 + $0x38] sm:$0xff]
        %v300 = vld [vmem:[%s3 + $0x40] sm:$0xff]
        %v301 = vld [vmem:[%s3 + $0x48] sm:$0xff]
        %v302 = vld [vmem:[%s3 + $0x50] sm:$0xff]
        %v303 = vld [vmem:[%s3 + $0x58] sm:$0xff]
        %v304 = vld [vmem:[%s3 + $0x60] sm:$0xff]
        %v305 = vld [vmem:[%s3 + $0x68] sm:$0xff]
        %v306 = vld [vmem:[%s3 + $0x70] sm:$0xff]
        %v307 = vld [vmem:[%s3 + $0x78] sm:$0xff]
        %v308 = vld [vmem:[%s4] sm:$0x1]
        %v310 = vperm.slane %v308, 0
        %312 = vmatpush.msra.mxu0 %v307
        %313 = vmatpush.msra.mxu0 %v306
        %314 = vmatpush.msra.mxu0 %v305
        %315 = vmatpush.msra.mxu0 %v304
        %316 = vmatpush.msra.mxu0 %v303
        %317 = vmatpush.msra.mxu0 %v302
        %318 = vmatpush.msra.mxu0 %v301
        %319 = vmatpush.msra.mxu0 %v300
        %320 = vmatpush.msra.mxu0 %v299
        %321 = vmatpush.msra.mxu0 %v298
        %322 = vmatpush.msra.mxu0 %v297
        %323 = vmatpush.msra.mxu0 %v296
        %324 = vmatpush.msra.mxu0 %v295
        %325 = vmatpush.msra.mxu0 %v294
        %326 = vmatpush.msra.mxu0 %v293
        %327 = vmatpush.msra.mxu0 %v292
        %328 = vmatmul.f32.gmra.mxu0 %v290
        %v329 = vpop.f32.mrf.mxu0
        %v330 = vadd.f32 %v310, %v329
        %331 = vmatmul.f32.gmra.mxu0 %v291
        %v332 = vpop.f32.mrf.mxu0
        %v333 = vadd.f32 %v310, %v332
        %334 = vdwg.mxu0
        %v335 = vmax.f32 %v330, 0.0
        %v336 = vmax.f32 %v333, 0.0
        %337 = vst.msk [vmem:[%s230] sm:$0xff] %vm260, %v335
        %338 = vst.msk [vmem:[%s230 + $0x8] sm:$0xff] %vm260, %v336
        %s339 = sand.u32 %s137, 1
        %s340 = scalar_lea.sflag [#allocation3], %s339
        %s341 = sand.u32 %s137, 1
        %s342 = smul.addr %s341, 16
        %s343 = scalar_lea.vmem [#allocation2], %s342
        // Predicated region
        $region41: #{relation_encoder.1} parent=39 // pred_check
          %p344 = pneg %p147
        $region42: #{relation_encoder.1} parent=39 // pred_check_branch
          %346 = sbr.rel (%p344) target = $region44
        $region43: #{relation_encoder.1} parent=39 // pred_region
          %s347 = smul.u32 2, %s19
          %s348 = ssub.s32 3, %s347
          %p349 = scmp.lt.s32.totalorder %s348, 2
          %s350 = scalar_select %p349, %s348, 2
          %s351 = smul.u32 8, %s350
          %s352 = ssub.s32 16, %s351
          %s353 = sshll.u32 %s352, 4
          %354 = vsyncadd %s340, %s353
          %p355 = scmp.ne.s32.totalorder 0, %s351
          %s356 = smul.addr %s347, 8
          %s357 = scalar_lea.hbm %s5, %s356
          %s358 = smul.u32 8, %s350
          %s359 = sshll.u32 %s343, 4
          %s360 = int_to_ptr.vmem [resolvable:$true] %s359
          %s361 = sshll.u32 %s357, 4
          %s362 = int_to_ptr.hbm [resolvable:$true] %s361
          %s363 = sshll.u32 %s358, 4
          %367 = dma.vmem_to_hbm [thread:$0]  (%p355), %s360, %s363, %s362, %s340, 128, 128, 8
        $region44: #{relation_encoder.1} parent=39 // pred_fallthru
          _
      $region40: #{relation_encoder.1} parent=5 // pred_fallthru
        _
      %p368 = scmp.le.s32.totalorder 2, %s14
      // Predicated region
      $region45: #{relation_encoder.1} parent=5 // pred_check
        %p369 = pneg %p368
      $region46: #{relation_encoder.1} parent=5 // pred_check_branch
        %371 = sbr.rel (%p369) target = $region48
      $region47: #{relation_encoder.1} parent=5 // pred_region
        %s372 = ssub.s32 %s14, 2
        // Predicated region
        $region49: #{relation_encoder.1} parent=47 // pred_check
          %p373 = pneg %p153
        $region50: #{relation_encoder.1} parent=47 // pred_check_branch
          %375 = sbr.rel (%p373) target = $region52
        $region51: #{relation_encoder.1} parent=47 // pred_region
          %s376 = sand.u32 %s138, 1
          %s377 = scalar_lea.sflag [#allocation3], %s376
          %s378 = sand.u32 %s138, 1
          %s379 = smul.addr %s378, 16
          %s380 = scalar_lea.vmem [#allocation2], %s379
          %382 = dma.done %s377, 256
        $region52: #{relation_encoder.1} parent=47 // pred_fallthru
          _
      $region48: #{relation_encoder.1} parent=5 // pred_fallthru
        _
    $region6: #{relation_encoder.1} parent=1 // loop_footer
      %s18 = sadd.s32 1, %s14
    $region7: #{relation_encoder.1} parent=1 // loop_footer_branch
      %13 = sbr.rel target = $region3
    $region8: #{relation_encoder.1} parent=1 // loop_exit
      _
    %383 = vsyncpa [#allocation3], 1
    %s384 = scalar_lea.sflag [#allocation3], 1
    %385 = vsyncpa %s384, 1

</llo_original>
